<compile_context>
chip_gen: v6e
topology: v6e:2x2x1
jax: 0.10.0
libtpu: 0.0.40
codegen_flags: <defaults>
</compile_context>

<pallas_src>
import jax
import jax.numpy as jnp
from jax.experimental import pallas as pl
from jax.experimental.pallas import tpu as pltpu


_LANE = 128
_SMALL_TOTAL = 32 * 1024  # below ~a few tiles, fused XLA maximum wins outright


def _relu_kernel(x_ref, o_ref):
    x = x_ref[...]
    o_ref[...] = jnp.maximum(x, jnp.zeros((), x.dtype))


def _sublane_granule(dtype):
    """Native sublane packing granule: 8 (f32), 16 (bf16/f16), 32 (int8/fp8)."""
    itemsize = jnp.dtype(dtype).itemsize
    return max(8, 8 * (4 // max(1, itemsize)))


def _target_block_bytes():
    """Per-generation block budget.

    v7x (64 MiB VMEM per TC, ~3.2 TB/s HBM) benefits most from big blocks
    (per-grid-step overhead ~0.35us is a larger fraction of each step), so use
    ~6 MiB there; v5e/v6e (128 MiB VMEM) are happy at ~4 MiB.
    """
    try:
        vmem = getattr(pltpu.get_tpu_info(), "vmem_capacity_bytes", 128 << 20)
    except Exception:  # info query is best-effort; fall back to a safe size
        vmem = 128 << 20
    return (6 << 20) if vmem <= (64 << 20) else (4 << 20)


def relu_pallas(x):
    """Elementwise ReLU; Pallas streaming kernel for multi-tile tensors."""
    orig_shape = x.shape
    dtype = x.dtype
    total = x.size
    zero = jnp.zeros((), dtype)

    # Fast path 1: tiny tensors (the module's literal [1, 80, 1, 1] lands
    # here). A pallas_call launch dwarfs the op; a fused XLA maximum is free.
    if total < _SMALL_TOTAL:
        return jnp.maximum(x, zero)

    # Fast path 2: element counts not divisible by 128 cannot be reshaped into
    # a lane-dense 2D slab without a pad pass + an output-slice pass (each a
    # full HBM read+write). For an HBM-bound op the fused XLA maximum is
    # strictly faster, so take it instead of tripling traffic.
    if total % _LANE != 0:
        return jnp.maximum(x, zero)

    # ---------------- Pallas path: zero extra HBM passes. ----------------
    flat = jnp.reshape(x, (-1,))  # free view for a contiguous array

    # Largest lane-multiple column count dividing total exactly -> no padding.
    cols = _LANE
    for c in (2048, 1024, 512, 256):
        if total % c == 0:
            cols = c
            break
    rows = total // cols
    x2 = flat.reshape(rows, cols)  # exact, free reshape

    itemsize = jnp.dtype(dtype).itemsize
    granule = _sublane_granule(dtype)
    block_bytes = _target_block_bytes()

    # Row tile sized to ~block_bytes, rounded to the dtype sublane granule.
    tile_rows = max(granule,
                    (block_bytes // (cols * itemsize)) // granule * granule)
    # Keep >= ~4 grid steps when possible: keeps the double-buffered pipeline
    # overlapping DMA with compute and lets v7x shard the parallel axis across
    # both TensorCores. A few extra steps cost almost nothing.
    quarter = -(-rows // 4)                      # ceil(rows / 4)
    quarter = -(-quarter // granule) * granule   # round up to sublane granule
    tile_rows = max(granule, min(tile_rows, quarter))

    # Ragged last block (rows % tile_rows != 0) is handled by Pallas: OOB
    # reads are unspecified, OOB writes are dropped. Safe because ReLU is
    # purely elementwise.
    grid = (pl.cdiv(rows, tile_rows),)

    # 2 double-buffered blocks (input + output) + headroom; explicit so the
    # larger v6e/v7x tiles also fit under v5e's 16 MiB scoped-VMEM default.
    vmem_limit = max(16 << 20, 4 * tile_rows * cols * itemsize + (8 << 20))

    out2 = pl.pallas_call(
        _relu_kernel,
        out_shape=jax.ShapeDtypeStruct((rows, cols), dtype),
        grid_spec=pltpu.PrefetchScalarGridSpec(
            num_scalar_prefetch=0,
            grid=grid,
            in_specs=[pl.BlockSpec((tile_rows, cols), lambda i: (i, 0))],
            out_specs=pl.BlockSpec((tile_rows, cols), lambda i: (i, 0)),
        ),
        compiler_params=pltpu.CompilerParams(
            dimension_semantics=("parallel",),
            vmem_limit_bytes=vmem_limit,
        ),
        cost_estimate=pl.CostEstimate(
            flops=total,
            transcendentals=0,
            bytes_accessed=2 * total * itemsize,
        ),
    )(x2)

    # Exact reshape back to the original (NCHW) shape; no slice, no transpose.
    return out2.reshape(orig_shape)


if __name__ == "__main__":
    key = jax.random.PRNGKey(0)
    k1, k2, k3, k4 = jax.random.split(key, 4)

    # 1) The module's literal input shape [1, 80, 1, 1] (tiny -> fast path).
    x_module = jax.random.normal(k1, (1, 80, 1, 1), dtype=jnp.float32)
    y_module = relu_pallas(x_module)
    jax.block_until_ready(y_module)
    assert y_module.shape == x_module.shape
    assert jnp.array_equal(y_module, jnp.maximum(x_module, 0.0))

    # 2) Multi-tile activation-like tensor -> Pallas path with a ragged last
    #    block (total = 40960 = 20 x 2048, grid of 3 blocks of 8 rows).
    x_big = jax.random.normal(k2, (2, 80, 16, 16), dtype=jnp.float32)
    y_big = relu_pallas(x_big)
    jax.block_until_ready(y_big)
    assert y_big.shape == x_big.shape
    assert jnp.array_equal(y_big, jnp.maximum(x_big, 0.0))

    # 3) bf16 input -> exercises the 16-row sublane granule.
    x_bf16 = jax.random.normal(k3, (2, 80, 32, 16), dtype=jnp.bfloat16)
    y_bf16 = relu_pallas(x_bf16)
    jax.block_until_ready(y_bf16)
    assert jnp.array_equal(y_bf16,
                           jnp.maximum(x_bf16, jnp.zeros((), jnp.bfloat16)))

    # 4) Misaligned element count -> fused-XLA fallback (no padding pass).
    x_odd = jax.random.normal(k4, (2, 80, 17, 19), dtype=jnp.float32)
    y_odd = relu_pallas(x_odd)
    jax.block_until_ready(y_odd)
    assert jnp.array_equal(y_odd, jnp.maximum(x_odd, 0.0))

    print("KERNEL_OK")
</pallas_src>

<mosaic_0001>
module attributes {stable_mosaic.version = 11 : i64} {
  func.func @_relu_kernel(%arg0: i32, %arg1: memref<8x2048xf32, #tpu.memory_space<vmem>>, %arg2: memref<8x2048xf32, #tpu.memory_space<vmem>>) attributes {dimension_semantics = [#tpu.dimension_semantics<parallel>], iteration_bounds = array<i64: 3>, scalar_prefetch = 0 : i64, scratch_operands = 0 : i64, tpu.core_type = #tpu.core_type<tc>, window_params = [{transform_indices = @transform_0, window_bounds = array<i64: 8, 2048>}, {transform_indices = @transform_1, window_bounds = array<i64: 8, 2048>}]} {
    %c0 = arith.constant 0 : index
    %c0_0 = arith.constant 0 : index
    %0 = vector.load %arg1[%c0, %c0_0] : memref<8x2048xf32, #tpu.memory_space<vmem>>, vector<8x2048xf32>
    %cst = arith.constant 0.000000e+00 : f32
    %1 = vector.broadcast %cst : f32 to vector<8x2048xf32>
    %2 = arith.maximumf %0, %1 : vector<8x2048xf32>
    %c0_1 = arith.constant 0 : index
    %c0_2 = arith.constant 0 : index
    %3 = vector.load %arg2[%c0_1, %c0_2] : memref<8x2048xf32, #tpu.memory_space<vmem>>, vector<8x2048xf32>
    tpu.vector_store %arg2[%c0_1, %c0_2], %2 {strides = array<i32>} : memref<8x2048xf32, #tpu.memory_space<vmem>>, vector<8x2048xf32>,
    return
  }
  func.func @transform_0(%arg0: i32) -> (i32, i32) {
    %c0_i32 = arith.constant 0 : i32
    %c0_i32_0 = arith.constant 0 : i32
    return %arg0, %c0_i32 : i32, i32
  }
  func.func @transform_1(%arg0: i32) -> (i32, i32) {
    %c0_i32 = arith.constant 0 : i32
    %c0_i32_0 = arith.constant 0 : i32
    return %arg0, %c0_i32 : i32, i32
  }
}

</mosaic_0001>

<llo_original>
// kernel: tpu_custom_call.1
$region0: #{tpu_custom_call.1}
  #allocation0 [shape = 'u32[]', space=smem, size = 0x4, offset = 0x4, fixed_abs, tag = 'smem constant byte address 0x4 - core index']
  #allocation1 [shape = 'u32[144,128]{1,0:T(1,128)}', space=vmem, size = 0x12000, scoped, tag = 'internal scratch']
  %s0 = inlined_call_operand.hbm [shape: f32[20,2048], index: 0, kind: input, shape index: {}]
  %s1 = inlined_call_operand.hbm [shape: f32[20,2048], index: 1, kind: output, shape index: {}]
  %s2 = sld [smem:[#allocation0]]
  $region41: #{tpu_custom_call.1} parent=0
    _
  %s4 = ssub.s32 1, %s2
  %s5 = scalar_select 0, %s4, %s2
  $region1: #{tpu_custom_call.1} parent=0
    #allocation2 [shape = 'u8[131072]{0}', space=vmem, size = 0x20000, scoped, tag = 'input window, operand 0']
    #allocation3 [shape = 's32[2]{0}', space=sflag, size = 0x8, scoped, tag = 'scoped memory for tpu_custom_call.1']
    #allocation4 [shape = 's32[2]{0}', space=sflag, size = 0x8, scoped, tag = 'scoped memory for tpu_custom_call.1']
    #allocation5 [shape = 'u8[131072]{0}', space=vmem, size = 0x20000, scoped, tag = 'output window, operand 0']
    %6 = vsyncpa [#allocation3], 0
    %s7 = scalar_lea.sflag [#allocation3], 1
    %8 = vsyncpa %s7, 0
    %9 = vsyncpa [#allocation4], 0
    %s10 = scalar_lea.sflag [#allocation4], 1
    %11 = vsyncpa %s10, 0
    loop: start=0, step=1, limit=5
    $region2: #{tpu_custom_call.1} parent=1 // loop_pre_header
      _
    $region3: #{tpu_custom_call.1} parent=1 // loop_header
      %s13 = sphi 0, %s17
      %p14 = scmp.ge.s32.totalorder %s13, 5
      %s23 = sphi 0, %s25
      %s26 = sphi 0, %s23
      %s27 = sphi 0, %s26
      %s43 = sphi 0, %s27
      %s49 = sphi 0, %s51
      %s52 = sphi 0, %s49
      %s53 = sphi 0, %s52
      %s69 = sphi 0, %s53
    $region4: #{tpu_custom_call.1} parent=1 // loop_header_branch
      %16 = sbr.rel (%p14) target = $region8
    $region5: #{tpu_custom_call.1} parent=1 // loop_body
      %s18 = ssub.s32 %s13, 1
      %s19 = ssub.s32 %s13, 2
      %s20 = sadd.s32 %s13, 1
      %s21 = ssub.s32 %s13, %s20
      %p22 = scmp.eq.s32.totalorder %s21, 0
      %s24 = sadd.s32 %s23, 1
      %s25 = scalar_select %p22, %s23, %s24
      %p28 = pneg %p22
      %p29 = scmp.eq.s32.totalorder %s13, 2
      %p30 = por %p28, %p29
      %p31 = scmp.ne.s32.totalorder %s23, %s26
      %p32 = scmp.eq.s32.totalorder %s13, 0
      %p33 = por %p31, %p32
      %p34 = scmp.ne.s32.totalorder %s23, %s26
      %p35 = scmp.eq.s32.totalorder %s18, 2
      %p36 = por %p34, %p35
      %p37 = scmp.ne.s32.totalorder %s26, %s27
      %p38 = scmp.eq.s32.totalorder %s18, 0
      %p39 = por %p37, %p38
      %p40 = scmp.ne.s32.totalorder %s26, %s27
      %p41 = scmp.eq.s32.totalorder %s19, 2
      %p42 = por %p40, %p41
      %p44 = scmp.ne.s32.totalorder %s27, %s43
      %p45 = scmp.eq.s32.totalorder %s19, 0
      %p46 = por %p44, %p45
      %s47 = ssub.s32 %s13, %s20
      %p48 = scmp.eq.s32.totalorder %s47, 0
      %s50 = sadd.s32 %s49, 1
      %s51 = scalar_select %p48, %s49, %s50
      %p54 = pneg %p48
      %p55 = scmp.eq.s32.totalorder %s13, 2
      %p56 = por %p54, %p55
      %p57 = scmp.ne.s32.totalorder %s49, %s52
      %p58 = scmp.eq.s32.totalorder %s13, 0
      %p59 = por %p57, %p58
      %p60 = scmp.ne.s32.totalorder %s49, %s52
      %p61 = scmp.eq.s32.totalorder %s18, 2
      %p62 = por %p60, %p61
      %p63 = scmp.ne.s32.totalorder %s52, %s53
      %p64 = scmp.eq.s32.totalorder %s18, 0
      %p65 = por %p63, %p64
      %p66 = scmp.ne.s32.totalorder %s52, %s53
      %p67 = scmp.eq.s32.totalorder %s19, 2
      %p68 = por %p66, %p67
      %p70 = scmp.ne.s32.totalorder %s53, %s69
      %p71 = scmp.eq.s32.totalorder %s19, 0
      %p72 = por %p70, %p71
      %p73 = scmp.le.s32.totalorder 1, %s13
      %p74 = scmp.lt.s32.totalorder %s13, 4
      %p75 = pnand %p73, %p74
      %p76 = pneg %p75
      // Predicated region
      $region9: #{tpu_custom_call.1} parent=5 // pred_check
        _
      $region10: #{tpu_custom_call.1} parent=5 // pred_check_branch
        %78 = sbr.rel (%p75) target = $region12
      $region11: #{tpu_custom_call.1} parent=5 // pred_region
        %s79 = ssub.s32 %s13, 1
      $region12: #{tpu_custom_call.1} parent=5 // pred_fallthru
        _
      %p80 = scmp.lt.s32.totalorder %s13, 3
      // Predicated region
      $region13: #{tpu_custom_call.1} parent=5 // pred_check
        %p81 = pneg %p80
      $region14: #{tpu_custom_call.1} parent=5 // pred_check_branch
        %83 = sbr.rel (%p81) target = $region16
      $region15: #{tpu_custom_call.1} parent=5 // pred_region
        // Predicated region
        $region17: #{tpu_custom_call.1} parent=15 // pred_check
          %p84 = pneg %p33
        $region18: #{tpu_custom_call.1} parent=15 // pred_check_branch
          %86 = sbr.rel (%p84) target = $region20
        $region19: #{tpu_custom_call.1} parent=15 // pred_region
          %s87 = sand.u32 %s23, 1
          %s88 = scalar_lea.sflag [#allocation3], %s87
          %s89 = sand.u32 %s23, 1
          %s90 = smul.addr %s89, 128
          %s91 = scalar_lea.vmem [#allocation2], %s90
          %s93 = ssub.s32 2048, 2048
          %94 = vsyncadd %s88, %s93
          %s95 = smul.addr %s13, 16
          %s96 = smul.addr %s95, 128
          %s97 = scalar_lea.hbm %s0, %s96
          %s99 = sshll.u32 %s91, 4
          %s100 = int_to_ptr.vmem [resolvable:$true] %s99
          %102 = dma.hbm_to_vmem [thread:$0]  %s97, 2048, %s100, %s88
        $region20: #{tpu_custom_call.1} parent=15 // pred_fallthru
          _
      $region16: #{tpu_custom_call.1} parent=5 // pred_fallthru
        _
      %p103 = scmp.le.s32.totalorder 1, %s13
      %p104 = scmp.lt.s32.totalorder %s13, 4
      %p105 = pnand %p103, %p104
      %p106 = pneg %p105
      // Predicated region
      $region21: #{tpu_custom_call.1} parent=5 // pred_check
        _
      $region22: #{tpu_custom_call.1} parent=5 // pred_check_branch
        %108 = sbr.rel (%p105) target = $region24
      $region23: #{tpu_custom_call.1} parent=5 // pred_region
        %s109 = ssub.s32 %s13, 1
        %s110 = sand.u32 %s26, 1
        %s111 = scalar_lea.sflag [#allocation3], %s110
        %s112 = sand.u32 %s26, 1
        %s113 = smul.addr %s112, 128
        %s114 = scalar_lea.vmem [#allocation2], %s113
        // Predicated region
        $region25: #{tpu_custom_call.1} parent=23 // pred_check
          %p115 = pneg %p39
        $region26: #{tpu_custom_call.1} parent=23 // pred_check_branch
          %117 = sbr.rel (%p115) target = $region28
        $region27: #{tpu_custom_call.1} parent=23 // pred_region
          %118 = dma.done %s111, 2048
        $region28: #{tpu_custom_call.1} parent=23 // pred_fallthru
          _
        %s119 = sand.u32 %s26, 1
        %s120 = scalar_lea.sflag [#allocation3], %s119
        %s121 = sand.u32 %s26, 1
        %s122 = smul.addr %s121, 128
        %s123 = scalar_lea.vmem [#allocation2], %s122
        %p124 = pneg %p39
        %p125 = pneg %p36
        %p126 = pneg %p65
        %p127 = pneg %p62
        %s128 = sand.u32 %s52, 1
        %s129 = scalar_lea.sflag [#allocation4], %s128
        %s130 = sand.u32 %s52, 1
        %s131 = smul.addr %s130, 128
        %s132 = scalar_lea.vmem [#allocation5], %s131
        %v133 = vld [vmem:[%s114] sm:$0xff]
        %v134 = vld [vmem:[%s114 + $0x8] sm:$0xff]
        %v135 = vld [vmem:[%s114 + $0x10] sm:$0xff]
        %v136 = vld [vmem:[%s114 + $0x18] sm:$0xff]
        %v137 = vld [vmem:[%s114 + $0x20] sm:$0xff]
        %v138 = vld [vmem:[%s114 + $0x28] sm:$0xff]
        %v139 = vld [vmem:[%s114 + $0x30] sm:$0xff]
        %v140 = vld [vmem:[%s114 + $0x38] sm:$0xff]
        %v141 = vld [vmem:[%s114 + $0x40] sm:$0xff]
        %v142 = vld [vmem:[%s114 + $0x48] sm:$0xff]
        %v143 = vld [vmem:[%s114 + $0x50] sm:$0xff]
        %v144 = vld [vmem:[%s114 + $0x58] sm:$0xff]
        %v145 = vld [vmem:[%s114 + $0x60] sm:$0xff]
        %v146 = vld [vmem:[%s114 + $0x68] sm:$0xff]
        %v147 = vld [vmem:[%s114 + $0x70] sm:$0xff]
        %v148 = vld [vmem:[%s114 + $0x78] sm:$0xff]
        %v149 = vmax.f32 %v133, 0.0
        %v150 = vmax.f32 %v134, 0.0
        %v151 = vmax.f32 %v135, 0.0
        %v152 = vmax.f32 %v136, 0.0
        %v153 = vmax.f32 %v137, 0.0
        %v154 = vmax.f32 %v138, 0.0
        %v155 = vmax.f32 %v139, 0.0
        %v156 = vmax.f32 %v140, 0.0
        %v157 = vmax.f32 %v141, 0.0
        %v158 = vmax.f32 %v142, 0.0
        %v159 = vmax.f32 %v143, 0.0
        %v160 = vmax.f32 %v144, 0.0
        %v161 = vmax.f32 %v145, 0.0
        %v162 = vmax.f32 %v146, 0.0
        %v163 = vmax.f32 %v147, 0.0
        %v164 = vmax.f32 %v148, 0.0
        %165 = vst [vmem:[%s132] sm:$0xff] %v149
        %166 = vst [vmem:[%s132 + $0x8] sm:$0xff] %v150
        %167 = vst [vmem:[%s132 + $0x10] sm:$0xff] %v151
        %168 = vst [vmem:[%s132 + $0x18] sm:$0xff] %v152
        %169 = vst [vmem:[%s132 + $0x20] sm:$0xff] %v153
        %170 = vst [vmem:[%s132 + $0x28] sm:$0xff] %v154
        %171 = vst [vmem:[%s132 + $0x30] sm:$0xff] %v155
        %172 = vst [vmem:[%s132 + $0x38] sm:$0xff] %v156
        %173 = vst [vmem:[%s132 + $0x40] sm:$0xff] %v157
        %174 = vst [vmem:[%s132 + $0x48] sm:$0xff] %v158
        %175 = vst [vmem:[%s132 + $0x50] sm:$0xff] %v159
        %176 = vst [vmem:[%s132 + $0x58] sm:$0xff] %v160
        %177 = vst [vmem:[%s132 + $0x60] sm:$0xff] %v161
        %178 = vst [vmem:[%s132 + $0x68] sm:$0xff] %v162
        %179 = vst [vmem:[%s132 + $0x70] sm:$0xff] %v163
        %180 = vst [vmem:[%s132 + $0x78] sm:$0xff] %v164
        %s181 = sand.u32 %s52, 1
        %s182 = scalar_lea.sflag [#allocation4], %s181
        %s183 = sand.u32 %s52, 1
        %s184 = smul.addr %s183, 128
        %s185 = scalar_lea.vmem [#allocation5], %s184
        // Predicated region
        $region29: #{tpu_custom_call.1} parent=23 // pred_check
          %p186 = pneg %p62
        $region30: #{tpu_custom_call.1} parent=23 // pred_check_branch
          %188 = sbr.rel (%p186) target = $region32
        $region31: #{tpu_custom_call.1} parent=23 // pred_region
          %s190 = ssub.s32 2048, 2048
          %191 = vsyncadd %s182, %s190
          %s192 = smul.addr %s18, 16
          %s193 = smul.addr %s192, 128
          %s194 = scalar_lea.hbm %s1, %s193
          %s196 = sshll.u32 %s185, 4
          %s197 = int_to_ptr.vmem [resolvable:$true] %s196
          %199 = dma.vmem_to_hbm [thread:$0]  %s197, 2048, %s194, %s182
        $region32: #{tpu_custom_call.1} parent=23 // pred_fallthru
          _
      $region24: #{tpu_custom_call.1} parent=5 // pred_fallthru
        _
      %p200 = scmp.le.s32.totalorder 2, %s13
      // Predicated region
      $region33: #{tpu_custom_call.1} parent=5 // pred_check
        %p201 = pneg %p200
      $region34: #{tpu_custom_call.1} parent=5 // pred_check_branch
        %203 = sbr.rel (%p201) target = $region36
      $region35: #{tpu_custom_call.1} parent=5 // pred_region
        %s204 = ssub.s32 %s13, 2
        // Predicated region
        $region37: #{tpu_custom_call.1} parent=35 // pred_check
          %p205 = pneg %p68
        $region38: #{tpu_custom_call.1} parent=35 // pred_check_branch
          %207 = sbr.rel (%p205) target = $region40
        $region39: #{tpu_custom_call.1} parent=35 // pred_region
          %s208 = sand.u32 %s53, 1
          %s209 = scalar_lea.sflag [#allocation4], %s208
          %s210 = sand.u32 %s53, 1
          %s211 = smul.addr %s210, 128
          %s212 = scalar_lea.vmem [#allocation5], %s211
          %213 = dma.done %s209, 2048
        $region40: #{tpu_custom_call.1} parent=35 // pred_fallthru
          _
      $region36: #{tpu_custom_call.1} parent=5 // pred_fallthru
        _
    $region6: #{tpu_custom_call.1} parent=1 // loop_footer
      %s17 = sadd.s32 1, %s13
    $region7: #{tpu_custom_call.1} parent=1 // loop_footer_branch
      %12 = sbr.rel target = $region3
    $region8: #{tpu_custom_call.1} parent=1 // loop_exit
      _
    %214 = vsyncpa [#allocation3], 1
    %s215 = scalar_lea.sflag [#allocation3], 1
    %216 = vsyncpa %s215, 1
    %217 = vsyncpa [#allocation4], 1
    %s218 = scalar_lea.sflag [#allocation4], 1
    %219 = vsyncpa %s218, 1

</llo_original>
